<compile_context>
chip_gen: v5e
topology: v5e:2x2
jax: 0.10.0
libtpu: 0.0.40
codegen_flags: <defaults>
</compile_context>

<pallas_src>
import functools

import jax
import jax.numpy as jnp
import numpy as np
from jax import lax
from jax.experimental import pallas as pl
from jax.experimental.pallas import tpu as pltpu

# Synthetic anchors: 3 scales x 3 anchors each (same structure as deep_transit).
ANCHORS = [[(0.28, 0.22), (0.38, 0.48), (0.90, 0.78)],
           [(0.07, 0.15), (0.15, 0.11), (0.14, 0.29)],
           [(0.02, 0.03), (0.04, 0.07), (0.08, 0.06)]]
num_anchors = sum(len(x) for x in ANCHORS)      # 9
NUM_PER_SCALE = num_anchors // 3                # 3
OUT_CH = 5 * num_anchors // 3                   # 15
BN_EPS = 1e-5


def _conv3x3_taps(x_ref, w1_ref, *, H, W):
    """SAME-padded 3x3 conv of ONE image as 9 accumulating per-tap matmuls.

    x_ref:  (C, HW)    matmul dtype; lane index = h*W + w of one image
    w1_ref: (9*C2, C)  matmul dtype; rows [t*C2, (t+1)*C2) are tap t's (C2, C)
    returns (C2, HW) float32
    """
    C, HW = x_ref.shape
    C2 = w1_ref.shape[0] // 9
    x = x_ref[...]

    # Per-lane (h, w) coordinates from an iota: no coordinate side-input DMA.
    lane = lax.broadcasted_iota(jnp.int32, (1, HW), 1)
    if (W & (W - 1)) == 0:
        w_idx = lane & (W - 1)
        h_idx = lane >> (W.bit_length() - 1)
    else:
        # TODO(synk): non-power-of-two W falls back to int div/mod on the VPU.
        w_idx = lane % W
        h_idx = lane // W

    acc = None
    for dh in (-1, 0, 1):
        for dw in (-1, 0, 1):
            t = (dh + 1) * 3 + (dw + 1)
            s = dh * W + dw                      # flat source offset
            # out[i] = x[(i + s) mod HW]; wraparound lanes are masked off below.
            rolled = x if s == 0 else pltpu.roll(x, shift=(-s) % HW, axis=1)
            conds = []
            if dh == -1:
                conds.append(h_idx >= 1)
            elif dh == 1:
                conds.append(h_idx <= H - 2)
            if dw == -1:
                conds.append(w_idx >= 1)
            elif dw == 1:
                conds.append(w_idx <= W - 2)
            if conds:                            # centre tap: no mask at all
                valid = conds[0]
                for c in conds[1:]:
                    valid = valid & c
                tap = jnp.where(valid, rolled, jnp.zeros_like(rolled))
            else:
                tap = rolled
            w_tap = w1_ref[pl.ds(t * C2, C2), :]             # (C2, C), static
            contrib = jnp.dot(w_tap, tap, preferred_element_type=jnp.float32)
            acc = contrib if acc is None else acc + contrib
    return acc                                   # (C2, HW) f32


def _conv_stats_kernel(x_ref, w1_ref, sum_ref, sumsq_ref, *, H, W):
    """Per-image partial BN statistics (sum, sum of squares) of conv1 output."""
    y = _conv3x3_taps(x_ref, w1_ref, H=H, W=W)               # (C2, HW) f32
    sum_ref[...] = jnp.sum(y, axis=1, keepdims=True)[None]   # (1, C2, 1)
    sumsq_ref[...] = jnp.sum(y * y, axis=1, keepdims=True)[None]


def _scale_prediction_kernel(x_ref, w1s_ref, shift_ref, w2_ref, b2_ref, o_ref,
                             *, H, W):
    """Per-image: 3x3 conv (BN scale pre-folded into weights) -> +shift ->
    LeakyReLU(0.1) -> 1x1 conv (+bias).  Lane-dense output store."""
    y = _conv3x3_taps(x_ref, w1s_ref, H=H, W=W)              # (C2, HW) f32
    z = y + shift_ref[...]                                   # folded BN shift
    z = jnp.where(z > 0, z, 0.1 * z)                         # LeakyReLU(0.1)
    out = jnp.dot(w2_ref[...], z.astype(w2_ref.dtype),
                  preferred_element_type=jnp.float32)        # (CO, HW)
    o_ref[...] = out + b2_ref[...]


def scale_prediction_forward(x_nchw, params, matmul_dtype=jnp.bfloat16):
    """PyTorch-equivalent forward.  Accepts NCHW, returns (N, 3, H, W, 5)."""
    w1, gamma, beta, w2, b2 = (params["w1"], params["gamma"], params["beta"],
                               params["w2"], params["b2"])
    N, C, H, W = x_nchw.shape
    C2 = 2 * C
    HW = H * W
    NHW = N * HW
    # Lane-dense contract: each per-image block puts H*W on the lane axis.
    assert HW % 128 == 0, f"H*W={HW} must be a multiple of 128 (pad spatially)"

    # Channels on sublanes, (batch, h, w) flattened on lanes; bf16 halves DMA.
    x_flat = jnp.transpose(x_nchw, (1, 0, 2, 3)).reshape(C, NHW).astype(matmul_dtype)

    # conv1 HWIO (3,3,C,C2) -> (9, C2, C): tap-major blocks of (C2, C).
    w1_taps = jnp.transpose(w1.reshape(9, C, C2), (0, 2, 1))         # f32
    w1_mat = w1_taps.reshape(9 * C2, C).astype(matmul_dtype)

    # ---- pass 1: per-image partial BN statistics of the conv1 output -------
    sums, sumsqs = pl.pallas_call(
        functools.partial(_conv_stats_kernel, H=H, W=W),
        out_shape=(jax.ShapeDtypeStruct((N, C2, 1), jnp.float32),
                   jax.ShapeDtypeStruct((N, C2, 1), jnp.float32)),
        grid_spec=pltpu.PrefetchScalarGridSpec(
            num_scalar_prefetch=0,
            grid=(N,),
            in_specs=[
                pl.BlockSpec((C, HW), lambda n: (0, n)),
                pl.BlockSpec((9 * C2, C), lambda n: (0, 0)),
            ],
            out_specs=[
                pl.BlockSpec((1, C2, 1), lambda n: (n, 0, 0)),
                pl.BlockSpec((1, C2, 1), lambda n: (n, 0, 0)),
            ],
        ),
        compiler_params=pltpu.CompilerParams(
            dimension_semantics=("parallel",)),
    )(x_flat, w1_mat)

    # ---- finalize training-mode BN (tiny (C2,) math stays in XLA) ----------
    inv_n = 1.0 / float(NHW)
    mean = jnp.sum(sums[:, :, 0], axis=0) * inv_n                    # (C2,)
    var = jnp.sum(sumsqs[:, :, 0], axis=0) * inv_n - mean * mean
    var = jnp.maximum(var, 0.0)
    scale = gamma.astype(jnp.float32) * lax.rsqrt(var + BN_EPS)      # (C2,)
    shift = beta.astype(jnp.float32) - mean * scale                  # (C2,)

    # Fold the BN scale into the conv1 weights; only `shift` enters pass 2.
    w1s_mat = (w1_taps * scale[None, :, None]).reshape(9 * C2, C).astype(matmul_dtype)
    shift_col = shift.reshape(C2, 1)
    w2_mat = jnp.transpose(w2).astype(matmul_dtype)                  # (CO, C2)
    b2_col = b2.reshape(OUT_CH, 1).astype(jnp.float32)

    # ---- pass 2: conv (recomputed, cheap) -> BN shift -> LeakyReLU -> 1x1 ---
    out_flat = pl.pallas_call(
        functools.partial(_scale_prediction_kernel, H=H, W=W),
        out_shape=jax.ShapeDtypeStruct((OUT_CH, NHW), jnp.float32),
        grid_spec=pltpu.PrefetchScalarGridSpec(
            num_scalar_prefetch=0,
            grid=(N,),
            in_specs=[
                pl.BlockSpec((C, HW), lambda n: (0, n)),
                pl.BlockSpec((9 * C2, C), lambda n: (0, 0)),
                pl.BlockSpec((C2, 1), lambda n: (0, 0)),
                pl.BlockSpec((OUT_CH, C2), lambda n: (0, 0)),
                pl.BlockSpec((OUT_CH, 1), lambda n: (0, 0)),
            ],
            out_specs=pl.BlockSpec((OUT_CH, HW), lambda n: (0, n)),
        ),
        compiler_params=pltpu.CompilerParams(
            dimension_semantics=("parallel",)),
    )(x_flat, w1s_mat, shift_col, w2_mat, b2_col)

    # TODO(synk): at real shapes emit bf16 / a consumer-native order so this
    # (tiny here) XLA transpose of the lane-dense output becomes free.
    out = out_flat.reshape(NUM_PER_SCALE, 5, N, H, W).transpose(2, 0, 3, 4, 1)
    return out


def init_params(key, in_channels):
    C = in_channels
    C2 = 2 * C
    k1, k2, k3, k4, k5 = jax.random.split(key, 5)
    # conv1 weight stored directly in HWIO: (3, 3, C, C2); bias=False (bn_act)
    w1 = jax.random.normal(k1, (3, 3, C, C2), jnp.float32) / jnp.sqrt(9.0 * C)
    gamma = 1.0 + 0.1 * jax.random.normal(k2, (C2,), jnp.float32)
    beta = 0.1 * jax.random.normal(k3, (C2,), jnp.float32)
    # conv2 (1x1) weight as (C2, OUT_CH) matrix; bias=True (bn_act=False)
    w2 = jax.random.normal(k4, (C2, OUT_CH), jnp.float32) / jnp.sqrt(float(C2))
    b2 = 0.1 * jax.random.normal(k5, (OUT_CH,), jnp.float32)
    return dict(w1=w1, gamma=gamma, beta=beta, w2=w2, b2=b2)


def reference_forward(x_nchw, params):
    """Pure-JAX reference mirroring the PyTorch module (training-mode BN)."""
    x = jnp.transpose(x_nchw, (0, 2, 3, 1))
    y1 = lax.conv_general_dilated(
        x, params["w1"], (1, 1), "SAME",
        dimension_numbers=("NHWC", "HWIO", "NHWC"))
    mean = jnp.mean(y1, axis=(0, 1, 2))
    var = jnp.var(y1, axis=(0, 1, 2))
    y = (y1 - mean) / jnp.sqrt(var + BN_EPS) * params["gamma"] + params["beta"]
    y = jnp.where(y > 0, y, 0.1 * y)
    out = jnp.einsum("nhwc,co->nhwo", y, params["w2"]) + params["b2"]
    N, H, W, _ = out.shape
    return out.reshape(N, H, W, NUM_PER_SCALE, 5).transpose(0, 3, 1, 2, 4)


if __name__ == "__main__":
    key = jax.random.PRNGKey(0)
    kx, kp = jax.random.split(key)
    N, C, H, W = 2, 4, 16, 16
    x = jax.random.normal(kx, (N, C, H, W), jnp.float32)
    params = init_params(kp, C)

    ref = reference_forward(x, params)

    # Strict f32-operand pass: validates kernel semantics with tight tolerance.
    out_f32 = jax.block_until_ready(
        scale_prediction_forward(x, params, matmul_dtype=jnp.float32))
    assert out_f32.shape == (N, NUM_PER_SCALE, H, W, 5), out_f32.shape
    np.testing.assert_allclose(np.asarray(out_f32), np.asarray(ref),
                               rtol=2e-3, atol=2e-3)

    # bf16 MXU-operand pass (production default): f32 accumulation, f32 BN and
    # element-wise math, only operand-rounding error remains.
    out_bf16 = jax.block_until_ready(
        scale_prediction_forward(x, params, matmul_dtype=jnp.bfloat16))
    assert out_bf16.shape == (N, NUM_PER_SCALE, H, W, 5), out_bf16.shape
    np.testing.assert_allclose(np.asarray(out_bf16), np.asarray(ref),
                               rtol=5e-2, atol=5e-2)

    print("KERNEL_OK")
</pallas_src>

<mosaic_0001>
module attributes {stable_mosaic.version = 11 : i64} {
  func.func @_conv_stats_kernel(%arg0: i32, %arg1: memref<4x256xf32, #tpu.memory_space<vmem>>, %arg2: memref<72x4xf32, #tpu.memory_space<vmem>>, %arg3: memref<1x8x1xf32, #tpu.memory_space<vmem>>, %arg4: memref<1x8x1xf32, #tpu.memory_space<vmem>>) attributes {dimension_semantics = [#tpu.dimension_semantics<parallel>], iteration_bounds = array<i64: 2>, scalar_prefetch = 0 : i64, scratch_operands = 0 : i64, tpu.core_type = #tpu.core_type<tc>, window_params = [{transform_indices = @transform_0, window_bounds = array<i64: 4, 256>}, {pipeline_mode = #tpu.pipeline_mode<synchronous>, transform_indices = @transform_1, window_bounds = array<i64: 72, 4>}, {transform_indices = @transform_2, window_bounds = array<i64: 1, 8, 1>}, {transform_indices = @transform_3, window_bounds = array<i64: 1, 8, 1>}]} {
    %c0 = arith.constant 0 : index
    %c0_0 = arith.constant 0 : index
    %0 = vector.load %arg1[%c0, %c0_0] : memref<4x256xf32, #tpu.memory_space<vmem>>, vector<4x256xf32>
    %1 = tpu.iota {dimensions = array<i32: 1>} : vector<1x256xi32>
    %c15_i32 = arith.constant 15 : i32
    %2 = vector.broadcast %c15_i32 : i32 to vector<1x256xi32>
    %3 = arith.andi %1, %2 : vector<1x256xi32>
    %c4_i32 = arith.constant 4 : i32
    %4 = vector.broadcast %c4_i32 : i32 to vector<1x256xi32>
    %5 = arith.shrsi %1, %4 : vector<1x256xi32>
    %c17_i32 = arith.constant 17 : i32
    %6 = tpu.dynamic_rotate %0 by %c17_i32 dim 1 : vector<4x256xf32>, i32 -> vector<4x256xf32>
    %c1_i32 = arith.constant 1 : i32
    %7 = vector.broadcast %c1_i32 : i32 to vector<1x256xi32>
    %8 = arith.cmpi sge, %5, %7 : vector<1x256xi32>
    %c1_i32_1 = arith.constant 1 : i32
    %9 = vector.broadcast %c1_i32_1 : i32 to vector<1x256xi32>
    %10 = arith.cmpi sge, %3, %9 : vector<1x256xi32>
    %11 = arith.andi %8, %10 : vector<1x256xi1>
    %cst = arith.constant 0.000000e+00 : f32
    %12 = vector.broadcast %cst : f32 to vector<4x256xf32>
    %13 = vector.shape_cast %11 : vector<1x256xi1> to vector<1x256xi1>
    %14 = vector.broadcast %13 : vector<1x256xi1> to vector<4x256xi1>
    %15 = arith.select %14, %6, %12 : vector<4x256xi1>, vector<4x256xf32>
    %c0_2 = arith.constant 0 : index
    %c0_3 = arith.constant 0 : index
    %16 = vector.load %arg2[%c0_2, %c0_3] : memref<72x4xf32, #tpu.memory_space<vmem>>, vector<8x4xf32>
    %cst_4 = arith.constant dense<0.000000e+00> : vector<8x256xf32>
    %17 = tpu.matmul %16, %15, %cst_4 {dimension_numbers = #tpu.dot_dimension_numbers<[1], [0], [0], [1], [0, 0, 1, 1], [], []>} : vector<8x4xf32>, vector<4x256xf32>, vector<8x256xf32> -> vector<8x256xf32>
    %c16_i32 = arith.constant 16 : i32
    %18 = tpu.dynamic_rotate %0 by %c16_i32 dim 1 : vector<4x256xf32>, i32 -> vector<4x256xf32>
    %c1_i32_5 = arith.constant 1 : i32
    %19 = vector.broadcast %c1_i32_5 : i32 to vector<1x256xi32>
    %20 = arith.cmpi sge, %5, %19 : vector<1x256xi32>
    %cst_6 = arith.constant 0.000000e+00 : f32
    %21 = vector.broadcast %cst_6 : f32 to vector<4x256xf32>
    %22 = vector.shape_cast %20 : vector<1x256xi1> to vector<1x256xi1>
    %23 = vector.broadcast %22 : vector<1x256xi1> to vector<4x256xi1>
    %24 = arith.select %23, %18, %21 : vector<4x256xi1>, vector<4x256xf32>
    %c8 = arith.constant 8 : index
    %c0_7 = arith.constant 0 : index
    %25 = vector.load %arg2[%c8, %c0_7] : memref<72x4xf32, #tpu.memory_space<vmem>>, vector<8x4xf32>
    %cst_8 = arith.constant dense<0.000000e+00> : vector<8x256xf32>
    %26 = tpu.matmul %25, %24, %cst_8 {dimension_numbers = #tpu.dot_dimension_numbers<[1], [0], [0], [1], [0, 0, 1, 1], [], []>} : vector<8x4xf32>, vector<4x256xf32>, vector<8x256xf32> -> vector<8x256xf32>
    %27 = arith.addf %17, %26 : vector<8x256xf32>
    %c15_i32_9 = arith.constant 15 : i32
    %28 = tpu.dynamic_rotate %0 by %c15_i32_9 dim 1 : vector<4x256xf32>, i32 -> vector<4x256xf32>
    %c1_i32_10 = arith.constant 1 : i32
    %29 = vector.broadcast %c1_i32_10 : i32 to vector<1x256xi32>
    %30 = arith.cmpi sge, %5, %29 : vector<1x256xi32>
    %c14_i32 = arith.constant 14 : i32
    %31 = vector.broadcast %c14_i32 : i32 to vector<1x256xi32>
    %32 = arith.cmpi sle, %3, %31 : vector<1x256xi32>
    %33 = arith.andi %30, %32 : vector<1x256xi1>
    %cst_11 = arith.constant 0.000000e+00 : f32
    %34 = vector.broadcast %cst_11 : f32 to vector<4x256xf32>
    %35 = vector.shape_cast %33 : vector<1x256xi1> to vector<1x256xi1>
    %36 = vector.broadcast %35 : vector<1x256xi1> to vector<4x256xi1>
    %37 = arith.select %36, %28, %34 : vector<4x256xi1>, vector<4x256xf32>
    %c16 = arith.constant 16 : index
    %c0_12 = arith.constant 0 : index
    %38 = vector.load %arg2[%c16, %c0_12] : memref<72x4xf32, #tpu.memory_space<vmem>>, vector<8x4xf32>
    %cst_13 = arith.constant dense<0.000000e+00> : vector<8x256xf32>
    %39 = tpu.matmul %38, %37, %cst_13 {dimension_numbers = #tpu.dot_dimension_numbers<[1], [0], [0], [1], [0, 0, 1, 1], [], []>} : vector<8x4xf32>, vector<4x256xf32>, vector<8x256xf32> -> vector<8x256xf32>
    %40 = arith.addf %27, %39 : vector<8x256xf32>
    %c1_i32_14 = arith.constant 1 : i32
    %41 = tpu.dynamic_rotate %0 by %c1_i32_14 dim 1 : vector<4x256xf32>, i32 -> vector<4x256xf32>
    %c1_i32_15 = arith.constant 1 : i32
    %42 = vector.broadcast %c1_i32_15 : i32 to vector<1x256xi32>
    %43 = arith.cmpi sge, %3, %42 : vector<1x256xi32>
    %cst_16 = arith.constant 0.000000e+00 : f32
    %44 = vector.broadcast %cst_16 : f32 to vector<4x256xf32>
    %45 = vector.shape_cast %43 : vector<1x256xi1> to vector<1x256xi1>
    %46 = vector.broadcast %45 : vector<1x256xi1> to vector<4x256xi1>
    %47 = arith.select %46, %41, %44 : vector<4x256xi1>, vector<4x256xf32>
    %c24 = arith.constant 24 : index
    %c0_17 = arith.constant 0 : index
    %48 = vector.load %arg2[%c24, %c0_17] : memref<72x4xf32, #tpu.memory_space<vmem>>, vector<8x4xf32>
    %cst_18 = arith.constant dense<0.000000e+00> : vector<8x256xf32>
    %49 = tpu.matmul %48, %47, %cst_18 {dimension_numbers = #tpu.dot_dimension_numbers<[1], [0], [0], [1], [0, 0, 1, 1], [], []>} : vector<8x4xf32>, vector<4x256xf32>, vector<8x256xf32> -> vector<8x256xf32>
    %50 = arith.addf %40, %49 : vector<8x256xf32>
    %c32 = arith.constant 32 : index
    %c0_19 = arith.constant 0 : index
    %51 = vector.load %arg2[%c32, %c0_19] : memref<72x4xf32, #tpu.memory_space<vmem>>, vector<8x4xf32>
    %cst_20 = arith.constant dense<0.000000e+00> : vector<8x256xf32>
    %52 = tpu.matmul %51, %0, %cst_20 {dimension_numbers = #tpu.dot_dimension_numbers<[1], [0], [0], [1], [0, 0, 1, 1], [], []>} : vector<8x4xf32>, vector<4x256xf32>, vector<8x256xf32> -> vector<8x256xf32>
    %53 = arith.addf %50, %52 : vector<8x256xf32>
    %c255_i32 = arith.constant 255 : i32
    %54 = tpu.dynamic_rotate %0 by %c255_i32 dim 1 : vector<4x256xf32>, i32 -> vector<4x256xf32>
    %c14_i32_21 = arith.constant 14 : i32
    %55 = vector.broadcast %c14_i32_21 : i32 to vector<1x256xi32>
    %56 = arith.cmpi sle, %3, %55 : vector<1x256xi32>
    %cst_22 = arith.constant 0.000000e+00 : f32
    %57 = vector.broadcast %cst_22 : f32 to vector<4x256xf32>
    %58 = vector.shape_cast %56 : vector<1x256xi1> to vector<1x256xi1>
    %59 = vector.broadcast %58 : vector<1x256xi1> to vector<4x256xi1>
    %60 = arith.select %59, %54, %57 : vector<4x256xi1>, vector<4x256xf32>
    %c40 = arith.constant 40 : index
    %c0_23 = arith.constant 0 : index
    %61 = vector.load %arg2[%c40, %c0_23] : memref<72x4xf32, #tpu.memory_space<vmem>>, vector<8x4xf32>
    %cst_24 = arith.constant dense<0.000000e+00> : vector<8x256xf32>
    %62 = tpu.matmul %61, %60, %cst_24 {dimension_numbers = #tpu.dot_dimension_numbers<[1], [0], [0], [1], [0, 0, 1, 1], [], []>} : vector<8x4xf32>, vector<4x256xf32>, vector<8x256xf32> -> vector<8x256xf32>
    %63 = arith.addf %53, %62 : vector<8x256xf32>
    %c241_i32 = arith.constant 241 : i32
    %64 = tpu.dynamic_rotate %0 by %c241_i32 dim 1 : vector<4x256xf32>, i32 -> vector<4x256xf32>
    %c14_i32_25 = arith.constant 14 : i32
    %65 = vector.broadcast %c14_i32_25 : i32 to vector<1x256xi32>
    %66 = arith.cmpi sle, %5, %65 : vector<1x256xi32>
    %c1_i32_26 = arith.constant 1 : i32
    %67 = vector.broadcast %c1_i32_26 : i32 to vector<1x256xi32>
    %68 = arith.cmpi sge, %3, %67 : vector<1x256xi32>
    %69 = arith.andi %66, %68 : vector<1x256xi1>
    %cst_27 = arith.constant 0.000000e+00 : f32
    %70 = vector.broadcast %cst_27 : f32 to vector<4x256xf32>
    %71 = vector.shape_cast %69 : vector<1x256xi1> to vector<1x256xi1>
    %72 = vector.broadcast %71 : vector<1x256xi1> to vector<4x256xi1>
    %73 = arith.select %72, %64, %70 : vector<4x256xi1>, vector<4x256xf32>
    %c48 = arith.constant 48 : index
    %c0_28 = arith.constant 0 : index
    %74 = vector.load %arg2[%c48, %c0_28] : memref<72x4xf32, #tpu.memory_space<vmem>>, vector<8x4xf32>
    %cst_29 = arith.constant dense<0.000000e+00> : vector<8x256xf32>
    %75 = tpu.matmul %74, %73, %cst_29 {dimension_numbers = #tpu.dot_dimension_numbers<[1], [0], [0], [1], [0, 0, 1, 1], [], []>} : vector<8x4xf32>, vector<4x256xf32>, vector<8x256xf32> -> vector<8x256xf32>
    %76 = arith.addf %63, %75 : vector<8x256xf32>
    %c240_i32 = arith.constant 240 : i32
    %77 = tpu.dynamic_rotate %0 by %c240_i32 dim 1 : vector<4x256xf32>, i32 -> vector<4x256xf32>
    %c14_i32_30 = arith.constant 14 : i32
    %78 = vector.broadcast %c14_i32_30 : i32 to vector<1x256xi32>
    %79 = arith.cmpi sle, %5, %78 : vector<1x256xi32>
    %cst_31 = arith.constant 0.000000e+00 : f32
    %80 = vector.broadcast %cst_31 : f32 to vector<4x256xf32>
    %81 = vector.shape_cast %79 : vector<1x256xi1> to vector<1x256xi1>
    %82 = vector.broadcast %81 : vector<1x256xi1> to vector<4x256xi1>
    %83 = arith.select %82, %77, %80 : vector<4x256xi1>, vector<4x256xf32>
    %c56 = arith.constant 56 : index
    %c0_32 = arith.constant 0 : index
    %84 = vector.load %arg2[%c56, %c0_32] : memref<72x4xf32, #tpu.memory_space<vmem>>, vector<8x4xf32>
    %cst_33 = arith.constant dense<0.000000e+00> : vector<8x256xf32>
    %85 = tpu.matmul %84, %83, %cst_33 {dimension_numbers = #tpu.dot_dimension_numbers<[1], [0], [0], [1], [0, 0, 1, 1], [], []>} : vector<8x4xf32>, vector<4x256xf32>, vector<8x256xf32> -> vector<8x256xf32>
    %86 = arith.addf %76, %85 : vector<8x256xf32>
    %c239_i32 = arith.constant 239 : i32
    %87 = tpu.dynamic_rotate %0 by %c239_i32 dim 1 : vector<4x256xf32>, i32 -> vector<4x256xf32>
    %c14_i32_34 = arith.constant 14 : i32
    %88 = vector.broadcast %c14_i32_34 : i32 to vector<1x256xi32>
    %89 = arith.cmpi sle, %5, %88 : vector<1x256xi32>
    %c14_i32_35 = arith.constant 14 : i32
    %90 = vector.broadcast %c14_i32_35 : i32 to vector<1x256xi32>
    %91 = arith.cmpi sle, %3, %90 : vector<1x256xi32>
    %92 = arith.andi %89, %91 : vector<1x256xi1>
    %cst_36 = arith.constant 0.000000e+00 : f32
    %93 = vector.broadcast %cst_36 : f32 to vector<4x256xf32>
    %94 = vector.shape_cast %92 : vector<1x256xi1> to vector<1x256xi1>
    %95 = vector.broadcast %94 : vector<1x256xi1> to vector<4x256xi1>
    %96 = arith.select %95, %87, %93 : vector<4x256xi1>, vector<4x256xf32>
    %c64 = arith.constant 64 : index
    %c0_37 = arith.constant 0 : index
    %97 = vector.load %arg2[%c64, %c0_37] : memref<72x4xf32, #tpu.memory_space<vmem>>, vector<8x4xf32>
    %cst_38 = arith.constant dense<0.000000e+00> : vector<8x256xf32>
    %98 = tpu.matmul %97, %96, %cst_38 {dimension_numbers = #tpu.dot_dimension_numbers<[1], [0], [0], [1], [0, 0, 1, 1], [], []>} : vector<8x4xf32>, vector<4x256xf32>, vector<8x256xf32> -> vector<8x256xf32>
    %99 = arith.addf %86, %98 : vector<8x256xf32>
    %cst_39 = arith.constant dense<0.000000e+00> : vector<8xf32>
    %100 = vector.multi_reduction <add>, %99, %cst_39 [1] : vector<8x256xf32> to vector<8xf32>
    %101 = vector.shape_cast %100 : vector<8xf32> to vector<8x1xf32>
    %102 = vector.shape_cast %101 : vector<8x1xf32> to vector<1x8x1xf32>
    %c0_40 = arith.constant 0 : index
    %c0_41 = arith.constant 0 : index
    %c0_42 = arith.constant 0 : index
    %103 = vector.load %arg3[%c0_40, %c0_41, %c0_42] : memref<1x8x1xf32, #tpu.memory_space<vmem>>, vector<1x8x1xf32>
    tpu.vector_store %arg3[%c0_40, %c0_41, %c0_42], %102 {strides = array<i32>} : memref<1x8x1xf32, #tpu.memory_space<vmem>>, vector<1x8x1xf32>,
    %104 = arith.mulf %99, %99 : vector<8x256xf32>
    %cst_43 = arith.constant dense<0.000000e+00> : vector<8xf32>
    %105 = vector.multi_reduction <add>, %104, %cst_43 [1] : vector<8x256xf32> to vector<8xf32>
    %106 = vector.shape_cast %105 : vector<8xf32> to vector<8x1xf32>
    %107 = vector.shape_cast %106 : vector<8x1xf32> to vector<1x8x1xf32>
    %c0_44 = arith.constant 0 : index
    %c0_45 = arith.constant 0 : index
    %c0_46 = arith.constant 0 : index
    %108 = vector.load %arg4[%c0_44, %c0_45, %c0_46] : memref<1x8x1xf32, #tpu.memory_space<vmem>>, vector<1x8x1xf32>
    tpu.vector_store %arg4[%c0_44, %c0_45, %c0_46], %107 {strides = array<i32>} : memref<1x8x1xf32, #tpu.memory_space<vmem>>, vector<1x8x1xf32>,
    return
  }
  func.func @transform_0(%arg0: i32) -> (i32, i32) {
    %c0_i32 = arith.constant 0 : i32
    %c0_i32_0 = arith.constant 0 : i32
    return %c0_i32, %arg0 : i32, i32
  }
  func.func @transform_1(%arg0: i32) -> (i32, i32) {
    %c0_i32 = arith.constant 0 : i32
    %c0_i32_0 = arith.constant 0 : i32
    %c0_i32_1 = arith.constant 0 : i32
    return %c0_i32, %c0_i32_0 : i32, i32
  }
  func.func @transform_2(%arg0: i32) -> (i32, i32, i32) {
    %c0_i32 = arith.constant 0 : i32
    %c0_i32_0 = arith.constant 0 : i32
    %c0_i32_1 = arith.constant 0 : i32
    return %arg0, %c0_i32, %c0_i32_0 : i32, i32, i32
  }
  func.func @transform_3(%arg0: i32) -> (i32, i32, i32) {
    %c0_i32 = arith.constant 0 : i32
    %c0_i32_0 = arith.constant 0 : i32
    %c0_i32_1 = arith.constant 0 : i32
    return %arg0, %c0_i32, %c0_i32_0 : i32, i32, i32
  }
}

</mosaic_0001>

<llo_original>
// kernel: tpu_custom_call.1
$region0: #{tpu_custom_call.1}
  #allocation0 [shape = 'u32[]', space=smem, size = 0x4, offset = 0x4, fixed_abs, tag = 'smem constant byte address 0x4 - core index']
  #allocation1 [shape = 'u32[72,128]{1,0:T(1,128)}', space=vmem, size = 0x9000, scoped, tag = 'internal scratch']
  %s0 = inlined_call_operand.vmem [shape: f32[4,512], index: 0, kind: input, shape index: {}]
  %s1 = inlined_call_operand.vmem [shape: f32[72,4], index: 1, kind: input, shape index: {}]
  %s2 = inlined_call_operand.vmem [shape: f32[2,8,1], index: 2, kind: output, shape index: {0}]
  %s3 = inlined_call_operand.vmem [shape: f32[2,8,1], index: 3, kind: output, shape index: {1}]
  %4 = xla_tuple %s2, %s3
  %s5 = sld [smem:[#allocation0]]
  $region49: #{tpu_custom_call.1} parent=0
    _
  %s7 = ssub.s32 1, %s5
  %s8 = scalar_select 0, %s7, %s5
  loop: start=0, step=1, limit=4
  $region2: #{tpu_custom_call.1} parent=0 // loop_pre_header
    _
  $region3: #{tpu_custom_call.1} parent=0 // loop_header
    %s10 = sphi 0, %s14
    %p11 = scmp.ge.s32.totalorder %s10, 4
    %s20 = sphi 0, %s22
    %s23 = sphi 0, %s20
    %s24 = sphi 0, %s23
    %s40 = sphi 0, %s24
    %s44 = sphi 0, %s44
    %s46 = sphi 0, %s44
    %s47 = sphi 0, %s46
    %s61 = sphi 0, %s47
    %s67 = sphi 0, %s69
    %s70 = sphi 0, %s67
    %s71 = sphi 0, %s70
    %s87 = sphi 0, %s71
    %s93 = sphi 0, %s95
    %s96 = sphi 0, %s93
    %s97 = sphi 0, %s96
    %s113 = sphi 0, %s97
  $region4: #{tpu_custom_call.1} parent=0 // loop_header_branch
    %13 = sbr.rel (%p11) target = $region8
  $region5: #{tpu_custom_call.1} parent=0 // loop_body
    %s15 = ssub.s32 %s10, 1
    %s16 = ssub.s32 %s10, 2
    %s17 = sadd.s32 %s10, 1
    %s18 = ssub.s32 %s10, %s17
    %p19 = scmp.eq.s32.totalorder %s18, 0
    %s21 = sadd.s32 %s20, 1
    %s22 = scalar_select %p19, %s20, %s21
    %p25 = pneg %p19
    %p26 = scmp.eq.s32.totalorder %s10, 1
    %p27 = por %p25, %p26
    %p28 = scmp.ne.s32.totalorder %s20, %s23
    %p29 = scmp.eq.s32.totalorder %s10, 0
    %p30 = por %p28, %p29
    %p31 = scmp.ne.s32.totalorder %s20, %s23
    %p32 = scmp.eq.s32.totalorder %s15, 1
    %p33 = por %p31, %p32
    %p34 = scmp.ne.s32.totalorder %s23, %s24
    %p35 = scmp.eq.s32.totalorder %s15, 0
    %p36 = por %p34, %p35
    %p37 = scmp.ne.s32.totalorder %s23, %s24
    %p38 = scmp.eq.s32.totalorder %s16, 1
    %p39 = por %p37, %p38
    %p41 = scmp.ne.s32.totalorder %s24, %s40
    %p42 = scmp.eq.s32.totalorder %s16, 0
    %p43 = por %p41, %p42
    %s45 = sadd.s32 %s44, 1
    %p48 = scmp.eq.s32.totalorder %s10, 1
    %p49 = scmp.ne.s32.totalorder %s44, %s46
    %p50 = scmp.eq.s32.totalorder %s10, 0
    %p51 = por %p49, %p50
    %p52 = scmp.ne.s32.totalorder %s44, %s46
    %p53 = scmp.eq.s32.totalorder %s15, 1
    %p54 = por %p52, %p53
    %p55 = scmp.ne.s32.totalorder %s46, %s47
    %p56 = scmp.eq.s32.totalorder %s15, 0
    %p57 = por %p55, %p56
    %p58 = scmp.ne.s32.totalorder %s46, %s47
    %p59 = scmp.eq.s32.totalorder %s16, 1
    %p60 = por %p58, %p59
    %p62 = scmp.ne.s32.totalorder %s47, %s61
    %p63 = scmp.eq.s32.totalorder %s16, 0
    %p64 = por %p62, %p63
    %s65 = ssub.s32 %s10, %s17
    %p66 = scmp.eq.s32.totalorder %s65, 0
    %s68 = sadd.s32 %s67, 1
    %s69 = scalar_select %p66, %s67, %s68
    %p72 = pneg %p66
    %p73 = scmp.eq.s32.totalorder %s10, 1
    %p74 = por %p72, %p73
    %p75 = scmp.ne.s32.totalorder %s67, %s70
    %p76 = scmp.eq.s32.totalorder %s10, 0
    %p77 = por %p75, %p76
    %p78 = scmp.ne.s32.totalorder %s67, %s70
    %p79 = scmp.eq.s32.totalorder %s15, 1
    %p80 = por %p78, %p79
    %p81 = scmp.ne.s32.totalorder %s70, %s71
    %p82 = scmp.eq.s32.totalorder %s15, 0
    %p83 = por %p81, %p82
    %p84 = scmp.ne.s32.totalorder %s70, %s71
    %p85 = scmp.eq.s32.totalorder %s16, 1
    %p86 = por %p84, %p85
    %p88 = scmp.ne.s32.totalorder %s71, %s87
    %p89 = scmp.eq.s32.totalorder %s16, 0
    %p90 = por %p88, %p89
    %s91 = ssub.s32 %s10, %s17
    %p92 = scmp.eq.s32.totalorder %s91, 0
    %s94 = sadd.s32 %s93, 1
    %s95 = scalar_select %p92, %s93, %s94
    %p98 = pneg %p92
    %p99 = scmp.eq.s32.totalorder %s10, 1
    %p100 = por %p98, %p99
    %p101 = scmp.ne.s32.totalorder %s93, %s96
    %p102 = scmp.eq.s32.totalorder %s10, 0
    %p103 = por %p101, %p102
    %p104 = scmp.ne.s32.totalorder %s93, %s96
    %p105 = scmp.eq.s32.totalorder %s15, 1
    %p106 = por %p104, %p105
    %p107 = scmp.ne.s32.totalorder %s96, %s97
    %p108 = scmp.eq.s32.totalorder %s15, 0
    %p109 = por %p107, %p108
    %p110 = scmp.ne.s32.totalorder %s96, %s97
    %p111 = scmp.eq.s32.totalorder %s16, 1
    %p112 = por %p110, %p111
    %p114 = scmp.ne.s32.totalorder %s97, %s113
    %p115 = scmp.eq.s32.totalorder %s16, 0
    %p116 = por %p114, %p115
    %p117 = scmp.le.s32.totalorder 1, %s10
    %p118 = scmp.lt.s32.totalorder %s10, 3
    %p119 = pnand %p117, %p118
    %p120 = pneg %p119
    // Predicated region
    $region9: #{tpu_custom_call.1} parent=5 // pred_check
      _
    $region10: #{tpu_custom_call.1} parent=5 // pred_check_branch
      %122 = sbr.rel (%p119) target = $region12
    $region11: #{tpu_custom_call.1} parent=5 // pred_region
      %s123 = ssub.s32 %s10, 1
      // Predicated region
      $region13: #{tpu_custom_call.1} parent=11 // pred_check
        %p124 = pneg %p57
      $region14: #{tpu_custom_call.1} parent=11 // pred_check_branch
        %126 = sbr.rel (%p124) target = $region16
      $region15: #{tpu_custom_call.1} parent=11 // pred_region
        _
      $region16: #{tpu_custom_call.1} parent=11 // pred_fallthru
        _
    $region12: #{tpu_custom_call.1} parent=5 // pred_fallthru
      _
    %p127 = scmp.lt.s32.totalorder %s10, 2
    // Predicated region
    $region17: #{tpu_custom_call.1} parent=5 // pred_check
      %p128 = pneg %p127
    $region18: #{tpu_custom_call.1} parent=5 // pred_check_branch
      %130 = sbr.rel (%p128) target = $region20
    $region19: #{tpu_custom_call.1} parent=5 // pred_region
      // Predicated region
      $region21: #{tpu_custom_call.1} parent=19 // pred_check
        %p131 = pneg %p30
      $region22: #{tpu_custom_call.1} parent=19 // pred_check_branch
        %133 = sbr.rel (%p131) target = $region24
      $region23: #{tpu_custom_call.1} parent=19 // pred_region
        %s134 = smul.u32 2, %s10
        %p135 = scmp.lt.s32.totalorder %s134, 3
        %s136 = scalar_select %p135, %s134, 3
        %s137 = smul.addr %s136, 4
        %s138 = scalar_lea.vmem %s0, %s137
        %s139 = smul.u32 2, %s10
      $region24: #{tpu_custom_call.1} parent=19 // pred_fallthru
        _
    $region20: #{tpu_custom_call.1} parent=5 // pred_fallthru
      _
    %p140 = scmp.le.s32.totalorder 1, %s10
    %p141 = scmp.lt.s32.totalorder %s10, 3
    %p142 = pnand %p140, %p141
    %p143 = pneg %p142
    // Predicated region
    $region25: #{tpu_custom_call.1} parent=5 // pred_check
      _
    $region26: #{tpu_custom_call.1} parent=5 // pred_check_branch
      %145 = sbr.rel (%p142) target = $region28
    $region27: #{tpu_custom_call.1} parent=5 // pred_region
      %s146 = ssub.s32 %s10, 1
      %s147 = smul.u32 2, %s15
      %p148 = scmp.lt.s32.totalorder %s147, 3
      %s149 = scalar_select %p148, %s147, 3
      %s150 = smul.addr %s149, 4
      %s151 = scalar_lea.vmem %s0, %s150
      %p152 = pneg %p36
      %p153 = pneg %p33
      %p154 = pneg %p57
      %p155 = pneg %p54
      %p156 = pneg %p83
      %p157 = pneg %p80
      %p158 = scmp.lt.s32.totalorder %s15, 1
      %s159 = scalar_select %p158, %s15, 1
      %s160 = smul.addr %s159, 8
      %s161 = scalar_lea.vmem %s2, %s160
      %p162 = pneg %p109
      %p163 = pneg %p106
      %p164 = scmp.lt.s32.totalorder %s15, 1
      %s165 = scalar_select %p164, %s15, 1
      %s166 = smul.addr %s165, 8
      %s167 = scalar_lea.vmem %s3, %s166
      %s168 = smul.u32 2, %s15
      %p169 = scmp.lt.s32.totalorder %s168, 3
      %s170 = scalar_select %p169, %s168, 3
      %s171 = smul.addr %s170, 4
      %s172 = scalar_lea.vmem %s0, %s171
      %s173 = smul.u32 2, %s15
      %p174 = scmp.lt.s32.totalorder %s15, 1
      %s175 = scalar_select %p174, %s15, 1
      %s176 = smul.addr %s175, 8
      %s177 = scalar_lea.vmem %s2, %s176
      %p178 = scmp.lt.s32.totalorder %s15, 1
      %s179 = scalar_select %p178, %s15, 1
      %s180 = smul.addr %s179, 8
      %s181 = scalar_lea.vmem %s3, %s180
      %v182 = vld [vmem:[%s172] sm:$0xff]
      %v183 = vlaneseq
      %v184 = vand.u32 %v183, 127
      %v185 = vadd.s32 %v184, 128
      %v186 = vand.u32 %v184, 15
      %v187 = vand.u32 %v185, 15
      %v188 = vshra.s32 %v184, 4
      %v189 = vshra.s32 %v185, 4
      %191 = vst [vmem:[#allocation1] ss:$2 sm:$0xff] %v182
      %v192 = vld.sshfl [vmem:[#allocation1] sm:$0xff pattern:$0x75316420]
      %v193 = vld.sshfl [vmem:[#allocation1 + $0x8] sm:$0xff pattern:$0x75316420]
      %196 = vrot.lane.b32.xlu0 %v192, 17
      %v197 = vpop.permute.xlu0 %196
      %198 = vrot.lane.b32.xlu0 %v193, 17
      %v199 = vpop.permute.xlu0 %198
      %vm200 = vcmp.lt.s32.totalorder %v184, 17
      %v201 = vsel %vm200, %v197, %v199
      %v202 = vsel %vm200, %v199, %v197
      %vm203 = vcmp.ge.s32.totalorder %v188, 1
      %vm204 = vcmp.ge.s32.totalorder %v189, 1
      %vm205 = vcmp.ge.s32.totalorder %v186, 1
      %vm206 = vcmp.ge.s32.totalorder %v187, 1
      %vm207 = vmand %vm203, %vm205
      %vm208 = vmand %vm204, %vm206
      %v209 = vsel %vm207, 1, 0
      %v210 = vsel %vm208, 1, 0
      %vm211 = vcmp.eq.s32.totalorder %v209, 1
      %vm212 = vcmp.eq.s32.totalorder %v210, 1
      %v213 = vsel %vm211, %v202, 0.0
      %v214 = vsel %vm212, %v201, 0.0
      %v215 = vld [vmem:[%s1] sm:$0xff]
      %216 = vst [vmem:[#allocation1] ss:$2 sm:$0xff] %v182
      %v217 = vld.sshfl [vmem:[#allocation1] sm:$0xff pattern:$0x75316420]
      %v218 = vld.sshfl [vmem:[#allocation1 + $0x8] sm:$0xff pattern:$0x75316420]
      %221 = vrot.lane.b32.xlu0 %v217, 16
      %v222 = vpop.permute.xlu0 %221
      %223 = vrot.lane.b32.xlu0 %v218, 16
      %v224 = vpop.permute.xlu0 %223
      %vm225 = vcmp.lt.s32.totalorder %v184, 16
      %v226 = vsel %vm225, %v222, %v224
      %v227 = vsel %vm225, %v224, %v222
      %v228 = vsel %vm203, 1, 0
      %v229 = vsel %vm204, 1, 0
      %vm230 = vcmp.eq.s32.totalorder %v228, 1
      %vm231 = vcmp.eq.s32.totalorder %v229, 1
      %v232 = vsel %vm230, %v227, 0.0
      %v233 = vsel %vm231, %v226, 0.0
      %v234 = vld [vmem:[%s1 + $0x8] sm:$0xff]
      %vm235 = vcmask 31744
      %v237 = vsel %vm235, %v234, 0
      %vm239 = vcmask 1043456
      %v241 = vsel %vm239, %v232, 0
      %v244 = vsel %vm239, %v233, 0
      %246 = vmatpush.msra.mxu0 0.0
      %247 = vmatpush.msra.mxu0 0.0
      %248 = vmatpush.msra.mxu0 0.0
      %249 = vmatpush.msra.mxu0 0.0
      %250 = vmatpush.msra.mxu0 0.0
      %251 = vmatpush.msra.mxu0 0.0
      %252 = vmatpush.msra.mxu0 0.0
      %253 = vmatpush.msra.mxu0 0.0
      %254 = vmatpush.msra.mxu0 0.0
      %255 = vmatpush.msra.mxu0 0.0
      %256 = vmatpush.msra.mxu0 0.0
      %257 = vmatpush.msra.mxu0 0.0
      %258 = vmatpush.msra.mxu0 0.0
      %259 = vmatpush.msra.mxu0 0.0
      %260 = vmatpush.msra.mxu0 0.0
      %261 = vmatpush.msra.mxu0 %v241
      %262 = vmatmul.f32.gmra.mxu0 %v237
      %v263 = vpop.f32.mrf.mxu0
      %v264 = vadd.f32 0.0, %v263
      %265 = vdwg.mxu0
      %266 = vmatpush.msra.mxu0 0.0
      %267 = vmatpush.msra.mxu0 0.0
      %268 = vmatpush.msra.mxu0 0.0
      %269 = vmatpush.msra.mxu0 0.0
      %270 = vmatpush.msra.mxu0 0.0
      %271 = vmatpush.msra.mxu0 0.0
      %272 = vmatpush.msra.mxu0 0.0
      %273 = vmatpush.msra.mxu0 0.0
      %274 = vmatpush.msra.mxu0 0.0
      %275 = vmatpush.msra.mxu0 0.0
      %276 = vmatpush.msra.mxu0 0.0
      %277 = vmatpush.msra.mxu0 0.0
      %278 = vmatpush.msra.mxu0 0.0
      %279 = vmatpush.msra.mxu0 0.0
      %280 = vmatpush.msra.mxu0 0.0
      %281 = vmatpush.msra.mxu0 %v244
      %282 = vmatmul.f32.gmra.mxu0 %v237
      %v283 = vpop.f32.mrf.mxu0
      %v284 = vadd.f32 0.0, %v283
      %285 = vdwg.mxu0
      %v287 = vsel %vm235, %v215, 0
      %v290 = vsel %vm239, %v213, 0
      %v293 = vsel %vm239, %v214, 0
      %295 = vmatpush.msra.mxu0 0.0
      %296 = vmatpush.msra.mxu0 0.0
      %297 = vmatpush.msra.mxu0 0.0
      %298 = vmatpush.msra.mxu0 0.0
      %299 = vmatpush.msra.mxu0 0.0
      %300 = vmatpush.msra.mxu0 0.0
      %301 = vmatpush.msra.mxu0 0.0
      %302 = vmatpush.msra.mxu0 0.0
      %303 = vmatpush.msra.mxu0 0.0
      %304 = vmatpush.msra.mxu0 0.0
      %305 = vmatpush.msra.mxu0 0.0
      %306 = vmatpush.msra.mxu0 0.0
      %307 = vmatpush.msra.mxu0 0.0
      %308 = vmatpush.msra.mxu0 0.0
      %309 = vmatpush.msra.mxu0 0.0
      %310 = vmatpush.msra.mxu0 %v290
      %311 = vmatmul.f32.gmra.mxu0 %v287
      %v312 = vpop.f32.mrf.mxu0
      %v313 = vadd.f32 %v264, %v312
      %314 = vdwg.mxu0
      %315 = vmatpush.msra.mxu0 0.0
      %316 = vmatpush.msra.mxu0 0.0
      %317 = vmatpush.msra.mxu0 0.0
      %318 = vmatpush.msra.mxu0 0.0
      %319 = vmatpush.msra.mxu0 0.0
      %320 = vmatpush.msra.mxu0 0.0
      %321 = vmatpush.msra.mxu0 0.0
      %322 = vmatpush.msra.mxu0 0.0
      %323 = vmatpush.msra.mxu0 0.0
      %324 = vmatpush.msra.mxu0 0.0
      %325 = vmatpush.msra.mxu0 0.0
      %326 = vmatpush.msra.mxu0 0.0
      %327 = vmatpush.msra.mxu0 0.0
      %328 = vmatpush.msra.mxu0 0.0
      %329 = vmatpush.msra.mxu0 0.0
      %330 = vmatpush.msra.mxu0 %v293
      %331 = vmatmul.f32.gmra.mxu0 %v287
      %v332 = vpop.f32.mrf.mxu0
      %v333 = vadd.f32 %v284, %v332
      %334 = vdwg.mxu0
      %335 = vst [vmem:[#allocation1] ss:$2 sm:$0xff] %v182
      %v336 = vld.sshfl [vmem:[#allocation1] sm:$0xff pattern:$0x75316420]
      %v337 = vld.sshfl [vmem:[#allocation1 + $0x8] sm:$0xff pattern:$0x75316420]
      %340 = vrot.lane.b32.xlu0 %v336, 15
      %v341 = vpop.permute.xlu0 %340
      %342 = vrot.lane.b32.xlu0 %v337, 15
      %v343 = vpop.permute.xlu0 %342
      %vm344 = vcmp.lt.s32.totalorder %v184, 15
      %v345 = vsel %vm344, %v341, %v343
      %v346 = vsel %vm344, %v343, %v341
      %vm347 = vcmp.le.s32.totalorder %v186, 14
      %vm348 = vcmp.le.s32.totalorder %v187, 14
      %vm349 = vmand %vm203, %vm347
      %vm350 = vmand %vm204, %vm348
      %v351 = vsel %vm349, 1, 0
      %v352 = vsel %vm350, 1, 0
      %vm353 = vcmp.eq.s32.totalorder %v351, 1
      %vm354 = vcmp.eq.s32.totalorder %v352, 1
      %v355 = vsel %vm353, %v346, 0.0
      %v356 = vsel %vm354, %v345, 0.0
      %v357 = vld [vmem:[%s1 + $0x10] sm:$0xff]
      %v359 = vsel %vm235, %v357, 0
      %v362 = vsel %vm239, %v355, 0
      %v365 = vsel %vm239, %v356, 0
      %367 = vmatpush.msra.mxu0 0.0
      %368 = vmatpush.msra.mxu0 0.0
      %369 = vmatpush.msra.mxu0 0.0
      %370 = vmatpush.msra.mxu0 0.0
      %371 = vmatpush.msra.mxu0 0.0
      %372 = vmatpush.msra.mxu0 0.0
      %373 = vmatpush.msra.mxu0 0.0
      %374 = vmatpush.msra.mxu0 0.0
      %375 = vmatpush.msra.mxu0 0.0
      %376 = vmatpush.msra.mxu0 0.0
      %377 = vmatpush.msra.mxu0 0.0
      %378 = vmatpush.msra.mxu0 0.0
      %379 = vmatpush.msra.mxu0 0.0
      %380 = vmatpush.msra.mxu0 0.0
      %381 = vmatpush.msra.mxu0 0.0
      %382 = vmatpush.msra.mxu0 %v362
      %383 = vmatmul.f32.gmra.mxu0 %v359
      %v384 = vpop.f32.mrf.mxu0
      %v385 = vadd.f32 0.0, %v384
      %386 = vdwg.mxu0
      %387 = vmatpush.msra.mxu0 0.0
      %388 = vmatpush.msra.mxu0 0.0
      %389 = vmatpush.msra.mxu0 0.0
      %390 = vmatpush.msra.mxu0 0.0
      %391 = vmatpush.msra.mxu0 0.0
      %392 = vmatpush.msra.mxu0 0.0
      %393 = vmatpush.msra.mxu0 0.0
      %394 = vmatpush.msra.mxu0 0.0
      %395 = vmatpush.msra.mxu0 0.0
      %396 = vmatpush.msra.mxu0 0.0
      %397 = vmatpush.msra.mxu0 0.0
      %398 = vmatpush.msra.mxu0 0.0
      %399 = vmatpush.msra.mxu0 0.0
      %400 = vmatpush.msra.mxu0 0.0
      %401 = vmatpush.msra.mxu0 0.0
      %402 = vmatpush.msra.mxu0 %v365
      %403 = vmatmul.f32.gmra.mxu0 %v359
      %v404 = vpop.f32.mrf.mxu0
      %v405 = vadd.f32 0.0, %v404
      %406 = vdwg.mxu0
      %v407 = vadd.f32 %v313, %v385
      %v408 = vadd.f32 %v333, %v405
      %409 = vst [vmem:[#allocation1] ss:$2 sm:$0xff] %v182
      %v410 = vld.sshfl [vmem:[#allocation1] sm:$0xff pattern:$0x75316420]
      %v411 = vld.sshfl [vmem:[#allocation1 + $0x8] sm:$0xff pattern:$0x75316420]
      %414 = vrot.lane.b32.xlu0 %v410, 1
      %v415 = vpop.permute.xlu0 %414
      %416 = vrot.lane.b32.xlu0 %v411, 1
      %v417 = vpop.permute.xlu0 %416
      %vm418 = vcmp.lt.s32.totalorder %v184, 1
      %v419 = vsel %vm418, %v415, %v417
      %v420 = vsel %vm418, %v417, %v415
      %v421 = vsel %vm205, 1, 0
      %v422 = vsel %vm206, 1, 0
      %vm423 = vcmp.eq.s32.totalorder %v421, 1
      %vm424 = vcmp.eq.s32.totalorder %v422, 1
      %v425 = vsel %vm423, %v420, 0.0
      %v426 = vsel %vm424, %v419, 0.0
      %v427 = vld [vmem:[%s1 + $0x18] sm:$0xff]
      %v429 = vsel %vm235, %v427, 0
      %v432 = vsel %vm239, %v425, 0
      %v435 = vsel %vm239, %v426, 0
      %437 = vmatpush.msra.mxu0 0.0
      %438 = vmatpush.msra.mxu0 0.0
      %439 = vmatpush.msra.mxu0 0.0
      %440 = vmatpush.msra.mxu0 0.0
      %441 = vmatpush.msra.mxu0 0.0
      %442 = vmatpush.msra.mxu0 0.0
      %443 = vmatpush.msra.mxu0 0.0
      %444 = vmatpush.msra.mxu0 0.0
      %445 = vmatpush.msra.mxu0 0.0
      %446 = vmatpush.msra.mxu0 0.0
      %447 = vmatpush.msra.mxu0 0.0
      %448 = vmatpush.msra.mxu0 0.0
      %449 = vmatpush.msra.mxu0 0.0
      %450 = vmatpush.msra.mxu0 0.0
      %451 = vmatpush.msra.mxu0 0.0
      %452 = vmatpush.msra.mxu0 %v432
      %453 = vmatmul.f32.gmra.mxu0 %v429
      %v454 = vpop.f32.mrf.mxu0
      %v455 = vadd.f32 0.0, %v454
      %456 = vdwg.mxu0
      %457 = vmatpush.msra.mxu0 0.0
      %458 = vmatpush.msra.mxu0 0.0
      %459 = vmatpush.msra.mxu0 0.0
      %460 = vmatpush.msra.mxu0 0.0
      %461 = vmatpush.msra.mxu0 0.0
      %462 = vmatpush.msra.mxu0 0.0
      %463 = vmatpush.msra.mxu0 0.0
      %464 = vmatpush.msra.mxu0 0.0
      %465 = vmatpush.msra.mxu0 0.0
      %466 = vmatpush.msra.mxu0 0.0
      %467 = vmatpush.msra.mxu0 0.0
      %468 = vmatpush.msra.mxu0 0.0
      %469 = vmatpush.msra.mxu0 0.0
      %470 = vmatpush.msra.mxu0 0.0
      %471 = vmatpush.msra.mxu0 0.0
      %472 = vmatpush.msra.mxu0 %v435
      %473 = vmatmul.f32.gmra.mxu0 %v429
      %v474 = vpop.f32.mrf.mxu0
      %v475 = vadd.f32 0.0, %v474
      %476 = vdwg.mxu0
      %v477 = vadd.f32 %v407, %v455
      %v478 = vadd.f32 %v408, %v475
      %v479 = vld [vmem:[%s1 + $0x20] sm:$0xff]
      %480 = vst [vmem:[#allocation1] ss:$2 sm:$0xff] %v182
      %v481 = vld.sshfl [vmem:[#allocation1] sm:$0xff pattern:$0x75316420]
      %v482 = vld.sshfl [vmem:[#allocation1 + $0x8] sm:$0xff pattern:$0x75316420]
      %v484 = vsel %vm235, %v479, 0
      %v486 = vsel %vm239, %v481, 0
      %v488 = vsel %vm239, %v482, 0
      %490 = vmatpush.msra.mxu0 0.0
      %491 = vmatpush.msra.mxu0 0.0
      %492 = vmatpush.msra.mxu0 0.0
      %493 = vmatpush.msra.mxu0 0.0
      %494 = vmatpush.msra.mxu0 0.0
      %495 = vmatpush.msra.mxu0 0.0
      %496 = vmatpush.msra.mxu0 0.0
      %497 = vmatpush.msra.mxu0 0.0
      %498 = vmatpush.msra.mxu0 0.0
      %499 = vmatpush.msra.mxu0 0.0
      %500 = vmatpush.msra.mxu0 0.0
      %501 = vmatpush.msra.mxu0 0.0
      %502 = vmatpush.msra.mxu0 0.0
      %503 = vmatpush.msra.mxu0 0.0
      %504 = vmatpush.msra.mxu0 0.0
      %505 = vmatpush.msra.mxu0 %v486
      %506 = vmatmul.f32.gmra.mxu0 %v484
      %v507 = vpop.f32.mrf.mxu0
      %v508 = vadd.f32 0.0, %v507
      %509 = vdwg.mxu0
      %510 = vmatpush.msra.mxu0 0.0
      %511 = vmatpush.msra.mxu0 0.0
      %512 = vmatpush.msra.mxu0 0.0
      %513 = vmatpush.msra.mxu0 0.0
      %514 = vmatpush.msra.mxu0 0.0
      %515 = vmatpush.msra.mxu0 0.0
      %516 = vmatpush.msra.mxu0 0.0
      %517 = vmatpush.msra.mxu0 0.0
      %518 = vmatpush.msra.mxu0 0.0
      %519 = vmatpush.msra.mxu0 0.0
      %520 = vmatpush.msra.mxu0 0.0
      %521 = vmatpush.msra.mxu0 0.0
      %522 = vmatpush.msra.mxu0 0.0
      %523 = vmatpush.msra.mxu0 0.0
      %524 = vmatpush.msra.mxu0 0.0
      %525 = vmatpush.msra.mxu0 %v488
      %526 = vmatmul.f32.gmra.mxu0 %v484
      %v527 = vpop.f32.mrf.mxu0
      %v528 = vadd.f32 0.0, %v527
      %529 = vdwg.mxu0
      %v530 = vadd.f32 %v477, %v508
      %v531 = vadd.f32 %v478, %v528
      %532 = vst [vmem:[#allocation1] ss:$2 sm:$0xff] %v182
      %v533 = vld.sshfl [vmem:[#allocation1] sm:$0xff pattern:$0x75316420]
      %v534 = vld.sshfl [vmem:[#allocation1 + $0x8] sm:$0xff pattern:$0x75316420]
      %537 = vrot.lane.b32.xlu0 %v533, 127
      %v538 = vpop.permute.xlu0 %537
      %539 = vrot.lane.b32.xlu0 %v534, 127
      %v540 = vpop.permute.xlu0 %539
      %vm541 = vcmp.lt.s32.totalorder %v184, 127
      %v542 = vsel %vm541, %v538, %v540
      %v543 = vsel %vm541, %v540, %v538
      %v544 = vsel %vm347, 1, 0
      %v545 = vsel %vm348, 1, 0
      %vm546 = vcmp.eq.s32.totalorder %v544, 1
      %vm547 = vcmp.eq.s32.totalorder %v545, 1
      %v548 = vsel %vm546, %v542, 0.0
      %v549 = vsel %vm547, %v543, 0.0
      %v550 = vld [vmem:[%s1 + $0x28] sm:$0xff]
      %v552 = vsel %vm235, %v550, 0
      %v555 = vsel %vm239, %v548, 0
      %v558 = vsel %vm239, %v549, 0
      %560 = vmatpush.msra.mxu0 0.0
      %561 = vmatpush.msra.mxu0 0.0
      %562 = vmatpush.msra.mxu0 0.0
      %563 = vmatpush.msra.mxu0 0.0
      %564 = vmatpush.msra.mxu0 0.0
      %565 = vmatpush.msra.mxu0 0.0
      %566 = vmatpush.msra.mxu0 0.0
      %567 = vmatpush.msra.mxu0 0.0
      %568 = vmatpush.msra.mxu0 0.0
      %569 = vmatpush.msra.mxu0 0.0
      %570 = vmatpush.msra.mxu0 0.0
      %571 = vmatpush.msra.mxu0 0.0
      %572 = vmatpush.msra.mxu0 0.0
      %573 = vmatpush.msra.mxu0 0.0
      %574 = vmatpush.msra.mxu0 0.0
      %575 = vmatpush.msra.mxu0 %v555
      %576 = vmatmul.f32.gmra.mxu0 %v552
      %v577 = vpop.f32.mrf.mxu0
      %v578 = vadd.f32 0.0, %v577
      %579 = vdwg.mxu0
      %580 = vmatpush.msra.mxu0 0.0
      %581 = vmatpush.msra.mxu0 0.0
      %582 = vmatpush.msra.mxu0 0.0
      %583 = vmatpush.msra.mxu0 0.0
      %584 = vmatpush.msra.mxu0 0.0
      %585 = vmatpush.msra.mxu0 0.0
      %586 = vmatpush.msra.mxu0 0.0
      %587 = vmatpush.msra.mxu0 0.0
      %588 = vmatpush.msra.mxu0 0.0
      %589 = vmatpush.msra.mxu0 0.0
      %590 = vmatpush.msra.mxu0 0.0
      %591 = vmatpush.msra.mxu0 0.0
      %592 = vmatpush.msra.mxu0 0.0
      %593 = vmatpush.msra.mxu0 0.0
      %594 = vmatpush.msra.mxu0 0.0
      %595 = vmatpush.msra.mxu0 %v558
      %596 = vmatmul.f32.gmra.mxu0 %v552
      %v597 = vpop.f32.mrf.mxu0
      %v598 = vadd.f32 0.0, %v597
      %599 = vdwg.mxu0
      %v600 = vadd.f32 %v530, %v578
      %v601 = vadd.f32 %v531, %v598
      %602 = vst [vmem:[#allocation1] ss:$2 sm:$0xff] %v182
      %v603 = vld.sshfl [vmem:[#allocation1] sm:$0xff pattern:$0x75316420]
      %v604 = vld.sshfl [vmem:[#allocation1 + $0x8] sm:$0xff pattern:$0x75316420]
      %607 = vrot.lane.b32.xlu0 %v603, 113
      %v608 = vpop.permute.xlu0 %607
      %609 = vrot.lane.b32.xlu0 %v604, 113
      %v610 = vpop.permute.xlu0 %609
      %vm611 = vcmp.lt.s32.totalorder %v184, 113
      %v612 = vsel %vm611, %v608, %v610
      %v613 = vsel %vm611, %v610, %v608
      %vm614 = vcmp.le.s32.totalorder %v188, 14
      %vm615 = vcmp.le.s32.totalorder %v189, 14
      %vm616 = vmand %vm614, %vm205
      %vm617 = vmand %vm615, %vm206
      %v618 = vsel %vm616, 1, 0
      %v619 = vsel %vm617, 1, 0
      %vm620 = vcmp.eq.s32.totalorder %v618, 1
      %vm621 = vcmp.eq.s32.totalorder %v619, 1
      %v622 = vsel %vm620, %v612, 0.0
      %v623 = vsel %vm621, %v613, 0.0
      %v624 = vld [vmem:[%s1 + $0x30] sm:$0xff]
      %v626 = vsel %vm235, %v624, 0
      %v629 = vsel %vm239, %v622, 0
      %v632 = vsel %vm239, %v623, 0
      %634 = vmatpush.msra.mxu0 0.0
      %635 = vmatpush.msra.mxu0 0.0
      %636 = vmatpush.msra.mxu0 0.0
      %637 = vmatpush.msra.mxu0 0.0
      %638 = vmatpush.msra.mxu0 0.0
      %639 = vmatpush.msra.mxu0 0.0
      %640 = vmatpush.msra.mxu0 0.0
      %641 = vmatpush.msra.mxu0 0.0
      %642 = vmatpush.msra.mxu0 0.0
      %643 = vmatpush.msra.mxu0 0.0
      %644 = vmatpush.msra.mxu0 0.0
      %645 = vmatpush.msra.mxu0 0.0
      %646 = vmatpush.msra.mxu0 0.0
      %647 = vmatpush.msra.mxu0 0.0
      %648 = vmatpush.msra.mxu0 0.0
      %649 = vmatpush.msra.mxu0 %v629
      %650 = vmatmul.f32.gmra.mxu0 %v626
      %v651 = vpop.f32.mrf.mxu0
      %v652 = vadd.f32 0.0, %v651
      %653 = vdwg.mxu0
      %654 = vmatpush.msra.mxu0 0.0
      %655 = vmatpush.msra.mxu0 0.0
      %656 = vmatpush.msra.mxu0 0.0
      %657 = vmatpush.msra.mxu0 0.0
      %658 = vmatpush.msra.mxu0 0.0
      %659 = vmatpush.msra.mxu0 0.0
      %660 = vmatpush.msra.mxu0 0.0
      %661 = vmatpush.msra.mxu0 0.0
      %662 = vmatpush.msra.mxu0 0.0
      %663 = vmatpush.msra.mxu0 0.0
      %664 = vmatpush.msra.mxu0 0.0
      %665 = vmatpush.msra.mxu0 0.0
      %666 = vmatpush.msra.mxu0 0.0
      %667 = vmatpush.msra.mxu0 0.0
      %668 = vmatpush.msra.mxu0 0.0
      %669 = vmatpush.msra.mxu0 %v632
      %670 = vmatmul.f32.gmra.mxu0 %v626
      %v671 = vpop.f32.mrf.mxu0
      %v672 = vadd.f32 0.0, %v671
      %673 = vdwg.mxu0
      %v674 = vadd.f32 %v600, %v652
      %v675 = vadd.f32 %v601, %v672
      %676 = vst [vmem:[#allocation1] ss:$2 sm:$0xff] %v182
      %v677 = vld.sshfl [vmem:[#allocation1] sm:$0xff pattern:$0x75316420]
      %v678 = vld.sshfl [vmem:[#allocation1 + $0x8] sm:$0xff pattern:$0x75316420]
      %681 = vrot.lane.b32.xlu0 %v677, 112
      %v682 = vpop.permute.xlu0 %681
      %683 = vrot.lane.b32.xlu0 %v678, 112
      %v684 = vpop.permute.xlu0 %683
      %vm685 = vcmp.lt.s32.totalorder %v184, 112
      %v686 = vsel %vm685, %v682, %v684
      %v687 = vsel %vm685, %v684, %v682
      %v688 = vsel %vm614, 1, 0
      %v689 = vsel %vm615, 1, 0
      %vm690 = vcmp.eq.s32.totalorder %v688, 1
      %vm691 = vcmp.eq.s32.totalorder %v689, 1
      %v692 = vsel %vm690, %v686, 0.0
      %v693 = vsel %vm691, %v687, 0.0
      %v694 = vld [vmem:[%s1 + $0x38] sm:$0xff]
      %v696 = vsel %vm235, %v694, 0
      %v699 = vsel %vm239, %v692, 0
      %v702 = vsel %vm239, %v693, 0
      %704 = vmatpush.msra.mxu0 0.0
      %705 = vmatpush.msra.mxu0 0.0
      %706 = vmatpush.msra.mxu0 0.0
      %707 = vmatpush.msra.mxu0 0.0
      %708 = vmatpush.msra.mxu0 0.0
      %709 = vmatpush.msra.mxu0 0.0
      %710 = vmatpush.msra.mxu0 0.0
      %711 = vmatpush.msra.mxu0 0.0
      %712 = vmatpush.msra.mxu0 0.0
      %713 = vmatpush.msra.mxu0 0.0
      %714 = vmatpush.msra.mxu0 0.0
      %715 = vmatpush.msra.mxu0 0.0
      %716 = vmatpush.msra.mxu0 0.0
      %717 = vmatpush.msra.mxu0 0.0
      %718 = vmatpush.msra.mxu0 0.0
      %719 = vmatpush.msra.mxu0 %v699
      %720 = vmatmul.f32.gmra.mxu0 %v696
      %v721 = vpop.f32.mrf.mxu0
      %v722 = vadd.f32 0.0, %v721
      %723 = vdwg.mxu0
      %724 = vmatpush.msra.mxu0 0.0
      %725 = vmatpush.msra.mxu0 0.0
      %726 = vmatpush.msra.mxu0 0.0
      %727 = vmatpush.msra.mxu0 0.0
      %728 = vmatpush.msra.mxu0 0.0
      %729 = vmatpush.msra.mxu0 0.0
      %730 = vmatpush.msra.mxu0 0.0
      %731 = vmatpush.msra.mxu0 0.0
      %732 = vmatpush.msra.mxu0 0.0
      %733 = vmatpush.msra.mxu0 0.0
      %734 = vmatpush.msra.mxu0 0.0
      %735 = vmatpush.msra.mxu0 0.0
      %736 = vmatpush.msra.mxu0 0.0
      %737 = vmatpush.msra.mxu0 0.0
      %738 = vmatpush.msra.mxu0 0.0
      %739 = vmatpush.msra.mxu0 %v702
      %740 = vmatmul.f32.gmra.mxu0 %v696
      %v741 = vpop.f32.mrf.mxu0
      %v742 = vadd.f32 0.0, %v741
      %743 = vdwg.mxu0
      %v744 = vadd.f32 %v674, %v722
      %v745 = vadd.f32 %v675, %v742
      %746 = vst [vmem:[#allocation1] ss:$2 sm:$0xff] %v182
      %v747 = vld.sshfl [vmem:[#allocation1] sm:$0xff pattern:$0x75316420]
      %v748 = vld.sshfl [vmem:[#allocation1 + $0x8] sm:$0xff pattern:$0x75316420]
      %751 = vrot.lane.b32.xlu0 %v747, 111
      %v752 = vpop.permute.xlu0 %751
      %753 = vrot.lane.b32.xlu0 %v748, 111
      %v754 = vpop.permute.xlu0 %753
      %vm755 = vcmp.lt.s32.totalorder %v184, 111
      %v756 = vsel %vm755, %v752, %v754
      %v757 = vsel %vm755, %v754, %v752
      %vm758 = vmand %vm614, %vm347
      %vm759 = vmand %vm615, %vm348
      %v760 = vsel %vm758, 1, 0
      %v761 = vsel %vm759, 1, 0
      %vm762 = vcmp.eq.s32.totalorder %v760, 1
      %vm763 = vcmp.eq.s32.totalorder %v761, 1
      %v764 = vsel %vm762, %v756, 0.0
      %v765 = vsel %vm763, %v757, 0.0
      %v766 = vld [vmem:[%s1 + $0x40] sm:$0xff]
      %v768 = vsel %vm235, %v766, 0
      %v771 = vsel %vm239, %v764, 0
      %v774 = vsel %vm239, %v765, 0
      %776 = vmatpush.msra.mxu0 0.0
      %777 = vmatpush.msra.mxu0 0.0
      %778 = vmatpush.msra.mxu0 0.0
      %779 = vmatpush.msra.mxu0 0.0
      %780 = vmatpush.msra.mxu0 0.0
      %781 = vmatpush.msra.mxu0 0.0
      %782 = vmatpush.msra.mxu0 0.0
      %783 = vmatpush.msra.mxu0 0.0
      %784 = vmatpush.msra.mxu0 0.0
      %785 = vmatpush.msra.mxu0 0.0
      %786 = vmatpush.msra.mxu0 0.0
      %787 = vmatpush.msra.mxu0 0.0
      %788 = vmatpush.msra.mxu0 0.0
      %789 = vmatpush.msra.mxu0 0.0
      %790 = vmatpush.msra.mxu0 0.0
      %791 = vmatpush.msra.mxu0 %v771
      %792 = vmatmul.f32.gmra.mxu0 %v768
      %v793 = vpop.f32.mrf.mxu0
      %v794 = vadd.f32 0.0, %v793
      %795 = vdwg.mxu0
      %796 = vmatpush.msra.mxu0 0.0
      %797 = vmatpush.msra.mxu0 0.0
      %798 = vmatpush.msra.mxu0 0.0
      %799 = vmatpush.msra.mxu0 0.0
      %800 = vmatpush.msra.mxu0 0.0
      %801 = vmatpush.msra.mxu0 0.0
      %802 = vmatpush.msra.mxu0 0.0
      %803 = vmatpush.msra.mxu0 0.0
      %804 = vmatpush.msra.mxu0 0.0
      %805 = vmatpush.msra.mxu0 0.0
      %806 = vmatpush.msra.mxu0 0.0
      %807 = vmatpush.msra.mxu0 0.0
      %808 = vmatpush.msra.mxu0 0.0
      %809 = vmatpush.msra.mxu0 0.0
      %810 = vmatpush.msra.mxu0 0.0
      %811 = vmatpush.msra.mxu0 %v774
      %812 = vmatmul.f32.gmra.mxu0 %v768
      %v813 = vpop.f32.mrf.mxu0
      %v814 = vadd.f32 0.0, %v813
      %815 = vdwg.mxu0
      %v816 = vadd.f32 %v744, %v794
      %v817 = vadd.f32 %v745, %v814
      %v818 = vadd.f32 %v816, %v817
      %819 = vadd.xlane.f32.xlu0 %v818
      %v820 = vpop.xlane.xlu0 %819
      %vm821 = vcmask 7168
      %822 = vst.msk [vmem:[%s177] sm:$0xff] %vm821, %v820
      %v823 = vmul.f32 %v816, %v816
      %v824 = vmul.f32 %v817, %v817
      %v825 = vadd.f32 %v823, %v824
      %826 = vadd.xlane.f32.xlu0 %v825
      %v827 = vpop.xlane.xlu0 %826
      %828 = vst.msk [vmem:[%s181] sm:$0xff] %vm821, %v827
      %p829 = scmp.lt.s32.totalorder %s15, 1
      %s830 = scalar_select %p829, %s15, 1
      %s831 = smul.addr %s830, 8
      %s832 = scalar_lea.vmem %s2, %s831
      %p833 = scmp.lt.s32.totalorder %s15, 1
      %s834 = scalar_select %p833, %s15, 1
      %s835 = smul.addr %s834, 8
      %s836 = scalar_lea.vmem %s3, %s835
      // Predicated region
      $region29: #{tpu_custom_call.1} parent=27 // pred_check
        %p837 = pneg %p80
      $region30: #{tpu_custom_call.1} parent=27 // pred_check_branch
        %839 = sbr.rel (%p837) target = $region32
      $region31: #{tpu_custom_call.1} parent=27 // pred_region
        _
      $region32: #{tpu_custom_call.1} parent=27 // pred_fallthru
        _
      // Predicated region
      $region33: #{tpu_custom_call.1} parent=27 // pred_check
        %p840 = pneg %p106
      $region34: #{tpu_custom_call.1} parent=27 // pred_check_branch
        %842 = sbr.rel (%p840) target = $region36
      $region35: #{tpu_custom_call.1} parent=27 // pred_region
        _
      $region36: #{tpu_custom_call.1} parent=27 // pred_fallthru
        _
    $region28: #{tpu_custom_call.1} parent=5 // pred_fallthru
      _
    %p843 = scmp.le.s32.totalorder 2, %s10
    // Predicated region
    $region37: #{tpu_custom_call.1} parent=5 // pred_check
      %p844 = pneg %p843
    $region38: #{tpu_custom_call.1} parent=5 // pred_check_branch
      %846 = sbr.rel (%p844) target = $region40
    $region39: #{tpu_custom_call.1} parent=5 // pred_region
      %s847 = ssub.s32 %s10, 2
      // Predicated region
      $region41: #{tpu_custom_call.1} parent=39 // pred_check
        %p848 = pneg %p86
      $region42: #{tpu_custom_call.1} parent=39 // pred_check_branch
        %850 = sbr.rel (%p848) target = $region44
      $region43: #{tpu_custom_call.1} parent=39 // pred_region
        %p851 = scmp.lt.s32.totalorder %s16, 1
        %s852 = scalar_select %p851, %s16, 1
        %s853 = smul.addr %s852, 8
        %s854 = scalar_lea.vmem %s2, %s853
      $region44: #{tpu_custom_call.1} parent=39 // pred_fallthru
        _
      // Predicated region
      $region45: #{tpu_custom_call.1} parent=39 // pred_check
        %p855 = pneg %p112
      $region46: #{tpu_custom_call.1} parent=39 // pred_check_branch
        %857 = sbr.rel (%p855) target = $region48
      $region47: #{tpu_custom_call.1} parent=39 // pred_region
        %p858 = scmp.lt.s32.totalorder %s16, 1
        %s859 = scalar_select %p858, %s16, 1
        %s860 = smul.addr %s859, 8
        %s861 = scalar_lea.vmem %s3, %s860
      $region48: #{tpu_custom_call.1} parent=39 // pred_fallthru
        _
    $region40: #{tpu_custom_call.1} parent=5 // pred_fallthru
      _
  $region6: #{tpu_custom_call.1} parent=0 // loop_footer
    %s14 = sadd.s32 1, %s10
  $region7: #{tpu_custom_call.1} parent=0 // loop_footer_branch
    %9 = sbr.rel target = $region3
  $region8: #{tpu_custom_call.1} parent=0 // loop_exit
    _

</llo_original>
